<compile_context>
chip_gen: v7x
topology: tpu7x:2x2x1
jax: 0.10.0
libtpu: 0.0.40
codegen_flags: <defaults>
</compile_context>

<pallas_src>
import jax
import jax.numpy as jnp
from jax.experimental import pallas as pl
from jax.experimental.pallas import tpu as pltpu


def categorical_logits_kernel(x_ref, wt_ref, b_ref, out_ref):
    # x_ref: (TM, K) f32 ; wt_ref: (K, N) f32 ; b_ref: (1, N) f32 ; out_ref: (TM, N) f32
    y = jnp.dot(x_ref[...], wt_ref[...], preferred_element_type=jnp.float32)
    y = y + b_ref[...]                                   # raw logits, f32

    # Numerically stable log-softmax — exactly what torch Categorical stores.
    m = jnp.max(y, axis=-1, keepdims=True)
    s = jnp.sum(jnp.exp(y - m), axis=-1, keepdims=True)
    out_ref[...] = (y - (m + jnp.log(s))).astype(out_ref.dtype)


def prepare_categorical_params(weight, bias):
    """Parameter prep done ONCE at init time (hoisted out of the per-call path).

    weight: (num_outputs, num_inputs); bias: (num_outputs,).
    Returns (wt, b2d) with wt: (num_inputs, num_outputs) f32, b2d: (1, num_outputs) f32.
    """
    wt = jnp.asarray(weight, jnp.float32).T
    b2d = jnp.asarray(bias, jnp.float32).reshape(1, -1)
    return wt, b2d


def categorical_forward(x, wt, b2d, *, block_rows=32768):
    """x: (B, num_inputs) f32; wt: (num_inputs, num_outputs); b2d: (1, num_outputs).

    Returns normalized logits (B, num_outputs) f32 — the canonical parameters of
    the FixedCategorical distribution. probs = probs_from_logits(logits).
    """
    B, K = x.shape
    N = wt.shape[1]

    # Batch tile: large enough to amortize the ~0.35 us/step grid overhead, shrunk
    # (sublane-aligned, multiple of 8) for small batches.  Per-tile double-buffered
    # VMEM at TM=32768: x 8 MiB + out 2 MiB — under the 32 MiB scoped default on
    # v5e / v6e / v7x, so no vmem_limit_bytes override is needed.
    tm = min(block_rows, ((B + 7) // 8) * 8)
    grid = (pl.cdiv(B, tm),)   # ragged final block handled by Pallas masking

    cost = pl.CostEstimate(
        flops=2 * B * K * N,
        transcendentals=B * (N + 1),                     # exp per elem + log per row
        bytes_accessed=B * K * 4 + K * N * 4 + N * 4 + B * N * 4,
    )

    logits = pl.pallas_call(
        categorical_logits_kernel,
        grid=grid,
        in_specs=[
            pl.BlockSpec((tm, K), lambda i: (i, 0)),     # x tile streams over batch
            pl.BlockSpec((K, N), lambda i: (0, 0)),      # weight resident
            pl.BlockSpec((1, N), lambda i: (0, 0)),      # bias resident
        ],
        out_specs=pl.BlockSpec((tm, N), lambda i: (i, 0)),
        out_shape=jax.ShapeDtypeStruct((B, N), jnp.float32),
        compiler_params=pltpu.CompilerParams(
            dimension_semantics=("parallel",),           # v7x: shard batch across 2 TCs
        ),
        cost_estimate=cost,
    )(x, wt, b2d)

    return logits


def probs_from_logits(logits):
    """probs of the distribution; exact since logits are already normalized."""
    return jnp.exp(logits)


def orthogonal_init(key, rows, cols, gain):
    """Deterministic equivalent of nn.init.orthogonal_ on a (rows, cols) matrix."""
    flat = jax.random.normal(key, (max(rows, cols), min(rows, cols)), dtype=jnp.float32)
    q, r = jnp.linalg.qr(flat)
    d = jnp.sign(jnp.diag(r))
    q = q * d[None, :]
    if rows < cols:
        q = q.T
    return gain * q[:rows, :cols]


if __name__ == "__main__":
    num_inputs = 32    # hidden size feeding the policy head
    num_outputs = 8    # number of discrete actions
    batch = 4

    key = jax.random.PRNGKey(0)
    k_x, k_w = jax.random.split(key)

    x = jax.random.normal(k_x, (batch, num_inputs), dtype=jnp.float32)
    weight = orthogonal_init(k_w, num_outputs, num_inputs, gain=0.01)   # (out, in)
    bias = jnp.zeros((num_outputs,), dtype=jnp.float32)                 # constant_(0)

    # Done once at init (hoisted), not per forward call.
    wt, b2d = prepare_categorical_params(weight, bias)

    logits = categorical_forward(x, wt, b2d)
    jax.block_until_ready(logits)
    probs = probs_from_logits(logits)

    # Pure-JAX f32 reference (kernel is all-f32 now, so no bf16 quantized ref needed).
    y_ref = x @ weight.T + bias
    logits_ref = y_ref - jax.scipy.special.logsumexp(y_ref, axis=-1, keepdims=True)
    probs_ref = jax.nn.softmax(y_ref, axis=-1)

    assert logits.shape == (batch, num_outputs) and probs.shape == (batch, num_outputs)
    assert jnp.allclose(logits, logits_ref, atol=1e-4, rtol=1e-4), "logits mismatch"
    assert jnp.allclose(probs, probs_ref, atol=1e-5), "probs mismatch"
    assert jnp.allclose(jnp.sum(probs, axis=-1), 1.0, atol=1e-5), "probs not normalized"

    print("KERNEL_OK")
</pallas_src>

<mosaic_0001>
module attributes {stable_mosaic.version = 11 : i64} {
  func.func @categorical_logits_kernel(%arg0: i32, %arg1: memref<8x32xf32, #tpu.memory_space<vmem>>, %arg2: memref<32x8xf32, #tpu.memory_space<vmem>>, %arg3: memref<1x8xf32, #tpu.memory_space<vmem>>, %arg4: memref<8x8xf32, #tpu.memory_space<vmem>>) attributes {dimension_semantics = [#tpu.dimension_semantics<parallel>], iteration_bounds = array<i64: 1>, scalar_prefetch = 0 : i64, scratch_operands = 0 : i64, tpu.core_type = #tpu.core_type<tc>, window_params = [{transform_indices = @transform_0, window_bounds = array<i64: 8, 32>}, {pipeline_mode = #tpu.pipeline_mode<synchronous>, transform_indices = @transform_1, window_bounds = array<i64: 32, 8>}, {pipeline_mode = #tpu.pipeline_mode<synchronous>, transform_indices = @transform_2, window_bounds = array<i64: 1, 8>}, {transform_indices = @transform_3, window_bounds = array<i64: 8, 8>}]} {
    %c0 = arith.constant 0 : index
    %c0_0 = arith.constant 0 : index
    %0 = vector.load %arg1[%c0, %c0_0] : memref<8x32xf32, #tpu.memory_space<vmem>>, vector<8x32xf32>
    %c0_1 = arith.constant 0 : index
    %c0_2 = arith.constant 0 : index
    %1 = vector.load %arg2[%c0_1, %c0_2] : memref<32x8xf32, #tpu.memory_space<vmem>>, vector<32x8xf32>
    %cst = arith.constant dense<0.000000e+00> : vector<8x8xf32>
    %2 = tpu.matmul %0, %1, %cst {dimension_numbers = #tpu.dot_dimension_numbers<[1], [0], [0], [1], [0, 0, 1, 1], [], []>} : vector<8x32xf32>, vector<32x8xf32>, vector<8x8xf32> -> vector<8x8xf32>
    %c0_3 = arith.constant 0 : index
    %c0_4 = arith.constant 0 : index
    %3 = vector.load %arg3[%c0_3, %c0_4] : memref<1x8xf32, #tpu.memory_space<vmem>>, vector<1x8xf32>
    %4 = vector.broadcast %3 : vector<1x8xf32> to vector<8x8xf32>
    %5 = arith.addf %2, %4 : vector<8x8xf32>
    %cst_5 = arith.constant dense<0xFF800000> : vector<8xf32>
    %6 = vector.multi_reduction <maximumf>, %5, %cst_5 [1] : vector<8x8xf32> to vector<8xf32>
    %7 = vector.shape_cast %6 : vector<8xf32> to vector<8x1xf32>
    %8 = vector.broadcast %7 : vector<8x1xf32> to vector<8x8xf32>
    %9 = arith.subf %5, %8 : vector<8x8xf32>
    %10 = math.exp %9 : vector<8x8xf32>
    %cst_6 = arith.constant dense<0.000000e+00> : vector<8xf32>
    %11 = vector.multi_reduction <add>, %10, %cst_6 [1] : vector<8x8xf32> to vector<8xf32>
    %12 = vector.shape_cast %11 : vector<8xf32> to vector<8x1xf32>
    %13 = math.log %12 : vector<8x1xf32>
    %14 = arith.addf %7, %13 : vector<8x1xf32>
    %15 = vector.broadcast %14 : vector<8x1xf32> to vector<8x8xf32>
    %16 = arith.subf %5, %15 : vector<8x8xf32>
    %c0_7 = arith.constant 0 : index
    %c0_8 = arith.constant 0 : index
    %17 = vector.load %arg4[%c0_7, %c0_8] : memref<8x8xf32, #tpu.memory_space<vmem>>, vector<8x8xf32>
    tpu.vector_store %arg4[%c0_7, %c0_8], %16 {strides = array<i32>} : memref<8x8xf32, #tpu.memory_space<vmem>>, vector<8x8xf32>,
    return
  }
  func.func @transform_0(%arg0: i32) -> (i32, i32) {
    %c0_i32 = arith.constant 0 : i32
    %c0_i32_0 = arith.constant 0 : i32
    return %arg0, %c0_i32 : i32, i32
  }
  func.func @transform_1(%arg0: i32) -> (i32, i32) {
    %c0_i32 = arith.constant 0 : i32
    %c0_i32_0 = arith.constant 0 : i32
    %c0_i32_1 = arith.constant 0 : i32
    return %c0_i32, %c0_i32_0 : i32, i32
  }
  func.func @transform_2(%arg0: i32) -> (i32, i32) {
    %c0_i32 = arith.constant 0 : i32
    %c0_i32_0 = arith.constant 0 : i32
    %c0_i32_1 = arith.constant 0 : i32
    return %c0_i32, %c0_i32_0 : i32, i32
  }
  func.func @transform_3(%arg0: i32) -> (i32, i32) {
    %c0_i32 = arith.constant 0 : i32
    %c0_i32_0 = arith.constant 0 : i32
    return %arg0, %c0_i32 : i32, i32
  }
}

</mosaic_0001>

<llo_original>
// kernel: tpu_custom_call.1
$region0: #{tpu_custom_call.1}
  #allocation0 [shape = 'u32[]', space=smem, size = 0x4, offset = 0x4, fixed_abs, tag = 'smem constant byte address 0x4 - core index']
  #allocation1 [shape = 'u32[144,128]{1,0:T(1,128)}', space=vmem, size = 0x12000, scoped, tag = 'internal scratch']
  %s0 = inlined_call_operand.vmem [shape: f32[4,32], index: 0, kind: input, shape index: {}]
  %s1 = inlined_call_operand.vmem [shape: f32[32,8], index: 1, kind: input, shape index: {}]
  %s2 = inlined_call_operand.vmem [shape: f32[1,8], index: 2, kind: input, shape index: {}]
  %s3 = inlined_call_operand.hbm [shape: f32[4,8], index: 3, kind: output, shape index: {}]
  %s4 = sld [smem:[#allocation0]]
  $region22: #{tpu_custom_call.1} parent=0
    _
  %s6 = ssub.s32 1, %s4
  %s7 = scalar_select 0, %s6, %s4
  $region1: #{tpu_custom_call.1} parent=0
    #allocation2 [shape = 'u8[4096]{0}', space=vmem, size = 0x1000, scoped, tag = 'output window, operand 0, single buffered']
    #allocation3 [shape = 's32[1]{0}', space=sflag, size = 0x4, scoped, tag = 'scoped memory for tpu_custom_call.1']
    %8 = vsyncpa [#allocation3], 0
    // Predicated region
    $region2: #{tpu_custom_call.1} parent=1 // pred_check
      _
    $region3: #{tpu_custom_call.1} parent=1 // pred_check_branch
      %10 = sbr.rel (0) target = $region5
    $region4: #{tpu_custom_call.1} parent=1 // pred_region
      _
    $region5: #{tpu_custom_call.1} parent=1 // pred_fallthru
      _
    // Predicated region
    $region6: #{tpu_custom_call.1} parent=1 // pred_check
      _
    $region7: #{tpu_custom_call.1} parent=1 // pred_check_branch
      %12 = sbr.rel (0) target = $region9
    $region8: #{tpu_custom_call.1} parent=1 // pred_region
      _
    $region9: #{tpu_custom_call.1} parent=1 // pred_fallthru
      _
    // Predicated region
    $region10: #{tpu_custom_call.1} parent=1 // pred_check
      _
    $region11: #{tpu_custom_call.1} parent=1 // pred_check_branch
      %14 = sbr.rel (0) target = $region13
    $region12: #{tpu_custom_call.1} parent=1 // pred_region
      _
    $region13: #{tpu_custom_call.1} parent=1 // pred_fallthru
      _
    %v15 = vld [vmem:[%s0] sm:$0xff]
    %v16 = vld [vmem:[%s1] sm:$0xff]
    %v17 = vld [vmem:[%s1 + $0x8] sm:$0xff]
    %v18 = vld [vmem:[%s1 + $0x10] sm:$0xff]
    %v19 = vld [vmem:[%s1 + $0x18] sm:$0xff]
    %v20 = vld [vmem:[%s2] sm:$0x1]
    %v22 = vlaneseq
    %v23 = vshrl.u32 %v22, 7
    %v24 = vsub.s32 0, %v23
    %v25 = vrot.slane %v20, %v24
    %vm27 = vcmask 261120
    %v29 = vsel %vm27, %v15, 0
    %31 = vmatprep.subr.mxu0 0.0
    %32 = vmatpush1.msra.mxu0 %v16
    %33 = vmatprep.subr.mxu0 0.0
    %34 = vmatpush1.msra.mxu0 %v17
    %35 = vmatprep.subr.mxu0 0.0
    %36 = vmatpush1.msra.mxu0 %v18
    %37 = vmatprep.subr.mxu0 0.0
    %38 = vmatpush1.msra.mxu0 %v19
    %39 = vmatprep.subr.mxu0 0.0
    %40 = vmatpush1.msra.mxu0 0.0
    %41 = vmatprep.subr.mxu0 0.0
    %42 = vmatpush1.msra.mxu0 0.0
    %43 = vmatprep.subr.mxu0 0.0
    %44 = vmatpush1.msra.mxu0 0.0
    %45 = vmatprep.subr.mxu0 0.0
    %46 = vmatpush1.msra.mxu0 0.0
    %47 = vmatprep.subr.mxu0 0.0
    %48 = vmatpush1.msra.mxu0 0.0
    %49 = vmatprep.subr.mxu0 0.0
    %50 = vmatpush1.msra.mxu0 0.0
    %51 = vmatprep.subr.mxu0 0.0
    %52 = vmatpush1.msra.mxu0 0.0
    %53 = vmatprep.subr.mxu0 0.0
    %54 = vmatpush1.msra.mxu0 0.0
    %55 = vmatprep.subr.mxu0 0.0
    %56 = vmatpush1.msra.mxu0 0.0
    %57 = vmatprep.subr.mxu0 0.0
    %58 = vmatpush1.msra.mxu0 0.0
    %59 = vmatprep.subr.mxu0 0.0
    %60 = vmatpush1.msra.mxu0 0.0
    %61 = vmatprep.subr.mxu0 0.0
    %62 = vmatpush1.msra.mxu0 0.0
    %63 = vmatprep.subr.mxu0 0.0
    %64 = vmatpush1.msra.mxu0 0.0
    %65 = vmatprep.subr.mxu0 0.0
    %66 = vmatpush1.msra.mxu0 0.0
    %67 = vmatprep.subr.mxu0 0.0
    %68 = vmatpush1.msra.mxu0 0.0
    %69 = vmatprep.subr.mxu0 0.0
    %70 = vmatpush1.msra.mxu0 0.0
    %71 = vmatprep.subr.mxu0 0.0
    %72 = vmatpush1.msra.mxu0 0.0
    %73 = vmatprep.subr.mxu0 0.0
    %74 = vmatpush1.msra.mxu0 0.0
    %75 = vmatprep.subr.mxu0 0.0
    %76 = vmatpush1.msra.mxu0 0.0
    %77 = vmatprep.subr.mxu0 0.0
    %78 = vmatpush1.msra.mxu0 0.0
    %79 = vmatprep.subr.mxu0 0.0
    %80 = vmatpush1.msra.mxu0 0.0
    %81 = vmatprep.subr.mxu0 0.0
    %82 = vmatpush1.msra.mxu0 0.0
    %83 = vmatprep.subr.mxu0 0.0
    %84 = vmatpush1.msra.mxu0 0.0
    %85 = vmatprep.subr.mxu0 0.0
    %86 = vmatpush1.msra.mxu0 0.0
    %87 = vmatprep.subr.mxu0 0.0
    %88 = vmatpush1.msra.mxu0 0.0
    %89 = vmatprep.subr.mxu0 0.0
    %90 = vmatpush1.msra.mxu0 0.0
    %91 = vmatprep.subr.mxu0 0.0
    %92 = vmatpush1.msra.mxu0 0.0
    %93 = vmatprep.subr.mxu0 0.0
    %94 = vmatpush1.msra.mxu0 0.0
    %95 = vmatprep.mubr.f32.mxu0 0.0
    %96 = vmatmul.mubr.f32.gmra.mrb[0].mxu0 %v29
    %v97 = vpop.f32.mrb[0].mxu0
    %v98 = vadd.f32 %v25, %v97
    %v99 = vpop.f32.mrb[0].mxu0
    %100 = vdwg.mxu0
    %vm101 = vcmask 64512
    %v102 = vsel %vm101, %v98, -inf
    %103 = vmax.xlane.f32.xlu0 %v102
    %v104 = vpop.xlane.xlu0 %103
    %v105 = vsub.f32 %v98, %v104
    %v106 = vmul.f32 %v105, 1.442695
    %v107 = vpow.pop %v106
    %v108 = vsel %vm101, %v107, 0.0
    %109 = vadd.xlane.f32.xlu0 %v108
    %v110 = vpop.xlane.xlu0 %109
    %v111 = vlog2.pop %v110
    %v112 = vmul.f32 %v111, 0.6931472
    %v113 = vadd.f32 %v104, %v112
    %v114 = vsub.f32 %v98, %v113
    %115 = vst.msk [vmem:[#allocation2] sm:$0xff] %vm101, %v114
    // Predicated region
    $region14: #{tpu_custom_call.1} parent=1 // pred_check
      _
    $region15: #{tpu_custom_call.1} parent=1 // pred_check_branch
      %117 = sbr.rel (0) target = $region17
    $region16: #{tpu_custom_call.1} parent=1 // pred_region
      %s119 = ssub.s32 128, 64
      %120 = vsyncadd [#allocation3], %s119
      %s121 = sshll.u32 [#allocation2], 4
      %s122 = int_to_ptr.vmem [resolvable:$true] %s121
      %127 = dma.vmem_to_hbm [thread:$0]  %s122, 64, %s3, [#allocation3], 64, 64, 4
    $region17: #{tpu_custom_call.1} parent=1 // pred_fallthru
      _
    // Predicated region
    $region18: #{tpu_custom_call.1} parent=1 // pred_check
      _
    $region19: #{tpu_custom_call.1} parent=1 // pred_check_branch
      %129 = sbr.rel (0) target = $region21
    $region20: #{tpu_custom_call.1} parent=1 // pred_region
      %130 = dma.done [#allocation3], 128
    $region21: #{tpu_custom_call.1} parent=1 // pred_fallthru
      _
    %131 = vsyncpa [#allocation3], 1

</llo_original>
